<compile_context>
chip_gen: v7x
topology: tpu7x:2x2x1
jax: 0.10.0
libtpu: 0.0.40
codegen_flags: <defaults>
</compile_context>

<pallas_src>
import jax
import jax.numpy as jnp
from jax import lax
from jax.experimental import pallas as pl
from jax.experimental.pallas import tpu as pltpu

HIDDEN = 128     # nn.Linear(input_size, 128) / nn.Linear(128, 128)
TM_MAX = 1024    # max batch-tile rows per grid step
SUB = 256        # rows per in-kernel sub-chunk (bounds f32 intermediate live ranges)


def _round_up(n: int, m: int) -> int:
    return (n + m - 1) // m * m


def _mlp_kernel(x_ref, w1_ref, b1_ref, w2_ref, b2_ref, w3_ref, b3_ref, o_ref):
    tm = x_ref.shape[0]
    bf16 = jnp.bfloat16

    def chunk(start, size):
        # Cast to bf16 only at the MXU boundary; accumulate and do elementwise in f32.
        xs = x_ref[pl.ds(start, size), :].astype(bf16)
        h = jnp.dot(xs, w1_ref[...], preferred_element_type=jnp.float32)
        h = jnp.maximum(h + b1_ref[...], 0.0)
        h = jnp.dot(h.astype(bf16), w2_ref[...], preferred_element_type=jnp.float32)
        h = jnp.maximum(h + b2_ref[...], 0.0)
        h = jnp.dot(h.astype(bf16), w3_ref[...], preferred_element_type=jnp.float32)
        o_ref[pl.ds(start, size), :] = (h + b3_ref[...]).astype(o_ref.dtype)

    n_full, rem = tm // SUB, tm % SUB
    if n_full > 0:
        def body(s, carry):
            chunk(pl.multiple_of(s * SUB, SUB), SUB)
            return carry
        lax.fori_loop(0, n_full, body, 0, unroll=True)
    if rem > 0:
        chunk(n_full * SUB, rem)


def prepare_params(params):
    """One-time prep: bf16 weights, (1, N) f32 biases. Call once, reuse every forward."""
    bf16 = jnp.bfloat16
    return {
        "w1": params["w1"].astype(bf16),
        "w2": params["w2"].astype(bf16),
        "w3": params["w3"].astype(bf16),
        "b1": params["b1"].astype(jnp.float32).reshape(1, -1),
        "b2": params["b2"].astype(jnp.float32).reshape(1, -1),
        "b3": params["b3"].astype(jnp.float32).reshape(1, -1),
    }


def simple_nn_forward(x, prepared, *, tm_max: int = TM_MAX):
    """x: (B, input_size) float32. prepared: output of prepare_params().

    Weights are stored (in_features, out_features): computes x @ W + b
    (== PyTorch's x @ weight.T + bias) per layer, ReLU after layers 1 and 2.
    """
    w1, b1 = prepared["w1"], prepared["b1"]
    w2, b2 = prepared["w2"], prepared["b2"]
    w3, b3 = prepared["w3"], prepared["b3"]

    B, in_size = x.shape
    out_size = w3.shape[1]

    # Batch tiling: keep b_pad within one 8-row tile of B; >= 2 grid steps once
    # B >= 16 so v7x's two TensorCores both get work.
    b_pad8 = _round_up(B, 8)
    n_tiles = pl.cdiv(b_pad8, tm_max)
    if b_pad8 >= 16:
        n_tiles = max(n_tiles, 2)
    tm = _round_up(pl.cdiv(b_pad8, n_tiles), 8)
    b_pad = n_tiles * tm

    x_in = x if b_pad == B else jnp.pad(x, ((0, b_pad - B), (0, 0)))

    def resident(shape):
        # Same block every grid step -> stays VMEM-resident (no re-DMA).
        return pl.BlockSpec(shape, lambda i: (0, 0))

    flops = 2 * b_pad * (in_size * HIDDEN + HIDDEN * HIDDEN + HIDDEN * out_size)
    bytes_accessed = (
        b_pad * in_size * 4                                  # x (f32)
        + (w1.size + w2.size + w3.size) * 2                  # bf16 weights
        + (b1.size + b2.size + b3.size) * 4                  # f32 biases
        + b_pad * out_size * 4                               # output (f32)
    )

    out_padded = pl.pallas_call(
        _mlp_kernel,
        out_shape=jax.ShapeDtypeStruct((b_pad, out_size), jnp.float32),
        grid=(n_tiles,),
        in_specs=[
            pl.BlockSpec((tm, in_size), lambda i: (i, 0)),        # x: batch-tiled, f32
            resident((in_size, HIDDEN)), resident((1, HIDDEN)),   # w1, b1
            resident((HIDDEN, HIDDEN)), resident((1, HIDDEN)),    # w2, b2
            resident((HIDDEN, out_size)), resident((1, out_size)),  # w3, b3
        ],
        out_specs=pl.BlockSpec((tm, out_size), lambda i: (i, 0)),
        compiler_params=pltpu.CompilerParams(
            dimension_semantics=("parallel",),
        ),
        cost_estimate=pl.CostEstimate(
            flops=flops, transcendentals=0, bytes_accessed=bytes_accessed),
    )(x_in, w1, b1, w2, b2, w3, b3)

    return out_padded if b_pad == B else out_padded[:B]


def init_params(key, input_size, output_size):
    """Deterministic init mimicking PyTorch nn.Linear default (uniform +/- 1/sqrt(fan_in))."""
    ks = jax.random.split(key, 6)

    def linear(kw, kb, fan_in, fan_out):
        bound = 1.0 / jnp.sqrt(fan_in)
        w = jax.random.uniform(kw, (fan_in, fan_out), jnp.float32, -bound, bound)
        b = jax.random.uniform(kb, (fan_out,), jnp.float32, -bound, bound)
        return w, b

    w1, b1 = linear(ks[0], ks[1], input_size, HIDDEN)
    w2, b2 = linear(ks[2], ks[3], HIDDEN, HIDDEN)
    w3, b3 = linear(ks[4], ks[5], HIDDEN, output_size)
    return {"w1": w1, "b1": b1, "w2": w2, "b2": b2, "w3": w3, "b3": b3}


def _ref_forward(x, params):
    """Pure-JAX reference with the same bf16-operand / f32-accumulate numerics."""
    bf16 = jnp.bfloat16
    h = jnp.dot(x.astype(bf16), params["w1"].astype(bf16),
                preferred_element_type=jnp.float32) + params["b1"]
    h = jnp.maximum(h, 0.0)
    h = jnp.dot(h.astype(bf16), params["w2"].astype(bf16),
                preferred_element_type=jnp.float32) + params["b2"]
    h = jnp.maximum(h, 0.0)
    return jnp.dot(h.astype(bf16), params["w3"].astype(bf16),
                   preferred_element_type=jnp.float32) + params["b3"]


if __name__ == "__main__":
    key = jax.random.PRNGKey(0)
    k_in, k_p = jax.random.split(key)

    batch = 8
    input_size = 64    # e.g. 8x8 board encoding
    output_size = 32   # action-value head

    x = jax.random.normal(k_in, (batch, input_size), dtype=jnp.float32)
    params = init_params(k_p, input_size, output_size)

    # One-time parameter prep (materialized eagerly, outside the per-call path).
    prepared = jax.tree_util.tree_map(jnp.asarray, prepare_params(params))
    prepared = jax.block_until_ready(prepared)

    out = jax.jit(simple_nn_forward)(x, prepared)
    jax.block_until_ready(out)

    ref = _ref_forward(x, params)
    assert out.shape == (batch, output_size)
    assert jnp.allclose(out, ref, atol=1e-3, rtol=1e-3), (
        float(jnp.max(jnp.abs(out - ref))))

    print("KERNEL_OK")
</pallas_src>

<mosaic_0001>
module attributes {stable_mosaic.version = 11 : i64} {
  func.func @_mlp_kernel(%arg0: i32, %arg1: memref<8x64xf32, #tpu.memory_space<vmem>>, %arg2: memref<64x128xbf16, #tpu.memory_space<vmem>>, %arg3: memref<1x128xf32, #tpu.memory_space<vmem>>, %arg4: memref<128x128xbf16, #tpu.memory_space<vmem>>, %arg5: memref<1x128xf32, #tpu.memory_space<vmem>>, %arg6: memref<128x32xbf16, #tpu.memory_space<vmem>>, %arg7: memref<1x32xf32, #tpu.memory_space<vmem>>, %arg8: memref<8x32xf32, #tpu.memory_space<vmem>>) attributes {dimension_semantics = [#tpu.dimension_semantics<parallel>], iteration_bounds = array<i64: 1>, scalar_prefetch = 0 : i64, scratch_operands = 0 : i64, tpu.core_type = #tpu.core_type<tc>, window_params = [{transform_indices = @transform_0, window_bounds = array<i64: 8, 64>}, {pipeline_mode = #tpu.pipeline_mode<synchronous>, transform_indices = @transform_1, window_bounds = array<i64: 64, 128>}, {pipeline_mode = #tpu.pipeline_mode<synchronous>, transform_indices = @transform_2, window_bounds = array<i64: 1, 128>}, {pipeline_mode = #tpu.pipeline_mode<synchronous>, transform_indices = @transform_3, window_bounds = array<i64: 128, 128>}, {pipeline_mode = #tpu.pipeline_mode<synchronous>, transform_indices = @transform_4, window_bounds = array<i64: 1, 128>}, {pipeline_mode = #tpu.pipeline_mode<synchronous>, transform_indices = @transform_5, window_bounds = array<i64: 128, 32>}, {pipeline_mode = #tpu.pipeline_mode<synchronous>, transform_indices = @transform_6, window_bounds = array<i64: 1, 32>}, {transform_indices = @transform_7, window_bounds = array<i64: 8, 32>}]} {
    %c0 = arith.constant 0 : index
    %c0_0 = arith.constant 0 : index
    %0 = vector.load %arg1[%c0, %c0_0] : memref<8x64xf32, #tpu.memory_space<vmem>>, vector<8x64xf32>
    %1 = arith.truncf %0 : vector<8x64xf32> to vector<8x64xbf16>
    %c0_1 = arith.constant 0 : index
    %c0_2 = arith.constant 0 : index
    %2 = vector.load %arg2[%c0_1, %c0_2] : memref<64x128xbf16, #tpu.memory_space<vmem>>, vector<64x128xbf16>
    %cst = arith.constant dense<0.000000e+00> : vector<8x128xf32>
    %3 = tpu.matmul %1, %2, %cst {dimension_numbers = #tpu.dot_dimension_numbers<[1], [0], [0], [1], [0, 0, 1, 1], [], []>} : vector<8x64xbf16>, vector<64x128xbf16>, vector<8x128xf32> -> vector<8x128xf32>
    %c0_3 = arith.constant 0 : index
    %c0_4 = arith.constant 0 : index
    %4 = vector.load %arg3[%c0_3, %c0_4] : memref<1x128xf32, #tpu.memory_space<vmem>>, vector<1x128xf32>
    %5 = vector.broadcast %4 : vector<1x128xf32> to vector<8x128xf32>
    %6 = arith.addf %3, %5 : vector<8x128xf32>
    %cst_5 = arith.constant 0.000000e+00 : f32
    %7 = vector.broadcast %cst_5 : f32 to vector<8x128xf32>
    %8 = arith.maximumf %6, %7 : vector<8x128xf32>
    %9 = arith.truncf %8 : vector<8x128xf32> to vector<8x128xbf16>
    %c0_6 = arith.constant 0 : index
    %c0_7 = arith.constant 0 : index
    %10 = vector.load %arg4[%c0_6, %c0_7] : memref<128x128xbf16, #tpu.memory_space<vmem>>, vector<128x128xbf16>
    %cst_8 = arith.constant dense<0.000000e+00> : vector<8x128xf32>
    %11 = tpu.matmul %9, %10, %cst_8 {dimension_numbers = #tpu.dot_dimension_numbers<[1], [0], [0], [1], [0, 0, 1, 1], [], []>} : vector<8x128xbf16>, vector<128x128xbf16>, vector<8x128xf32> -> vector<8x128xf32>
    %c0_9 = arith.constant 0 : index
    %c0_10 = arith.constant 0 : index
    %12 = vector.load %arg5[%c0_9, %c0_10] : memref<1x128xf32, #tpu.memory_space<vmem>>, vector<1x128xf32>
    %13 = vector.broadcast %12 : vector<1x128xf32> to vector<8x128xf32>
    %14 = arith.addf %11, %13 : vector<8x128xf32>
    %cst_11 = arith.constant 0.000000e+00 : f32
    %15 = vector.broadcast %cst_11 : f32 to vector<8x128xf32>
    %16 = arith.maximumf %14, %15 : vector<8x128xf32>
    %17 = arith.truncf %16 : vector<8x128xf32> to vector<8x128xbf16>
    %c0_12 = arith.constant 0 : index
    %c0_13 = arith.constant 0 : index
    %18 = vector.load %arg6[%c0_12, %c0_13] : memref<128x32xbf16, #tpu.memory_space<vmem>>, vector<128x32xbf16>
    %cst_14 = arith.constant dense<0.000000e+00> : vector<8x32xf32>
    %19 = tpu.matmul %17, %18, %cst_14 {dimension_numbers = #tpu.dot_dimension_numbers<[1], [0], [0], [1], [0, 0, 1, 1], [], []>} : vector<8x128xbf16>, vector<128x32xbf16>, vector<8x32xf32> -> vector<8x32xf32>
    %c0_15 = arith.constant 0 : index
    %c0_16 = arith.constant 0 : index
    %20 = vector.load %arg7[%c0_15, %c0_16] : memref<1x32xf32, #tpu.memory_space<vmem>>, vector<1x32xf32>
    %21 = vector.broadcast %20 : vector<1x32xf32> to vector<8x32xf32>
    %22 = arith.addf %19, %21 : vector<8x32xf32>
    %c0_17 = arith.constant 0 : index
    %c0_18 = arith.constant 0 : index
    %23 = vector.load %arg8[%c0_17, %c0_18] : memref<8x32xf32, #tpu.memory_space<vmem>>, vector<8x32xf32>
    tpu.vector_store %arg8[%c0_17, %c0_18], %22 {strides = array<i32>} : memref<8x32xf32, #tpu.memory_space<vmem>>, vector<8x32xf32>,
    return
  }
  func.func @transform_0(%arg0: i32) -> (i32, i32) {
    %c0_i32 = arith.constant 0 : i32
    %c0_i32_0 = arith.constant 0 : i32
    return %arg0, %c0_i32 : i32, i32
  }
  func.func @transform_1(%arg0: i32) -> (i32, i32) {
    %c0_i32 = arith.constant 0 : i32
    %c0_i32_0 = arith.constant 0 : i32
    %c0_i32_1 = arith.constant 0 : i32
    return %c0_i32, %c0_i32_0 : i32, i32
  }
  func.func @transform_2(%arg0: i32) -> (i32, i32) {
    %c0_i32 = arith.constant 0 : i32
    %c0_i32_0 = arith.constant 0 : i32
    %c0_i32_1 = arith.constant 0 : i32
    return %c0_i32, %c0_i32_0 : i32, i32
  }
  func.func @transform_3(%arg0: i32) -> (i32, i32) {
    %c0_i32 = arith.constant 0 : i32
    %c0_i32_0 = arith.constant 0 : i32
    %c0_i32_1 = arith.constant 0 : i32
    return %c0_i32, %c0_i32_0 : i32, i32
  }
  func.func @transform_4(%arg0: i32) -> (i32, i32) {
    %c0_i32 = arith.constant 0 : i32
    %c0_i32_0 = arith.constant 0 : i32
    %c0_i32_1 = arith.constant 0 : i32
    return %c0_i32, %c0_i32_0 : i32, i32
  }
  func.func @transform_5(%arg0: i32) -> (i32, i32) {
    %c0_i32 = arith.constant 0 : i32
    %c0_i32_0 = arith.constant 0 : i32
    %c0_i32_1 = arith.constant 0 : i32
    return %c0_i32, %c0_i32_0 : i32, i32
  }
  func.func @transform_6(%arg0: i32) -> (i32, i32) {
    %c0_i32 = arith.constant 0 : i32
    %c0_i32_0 = arith.constant 0 : i32
    %c0_i32_1 = arith.constant 0 : i32
    return %c0_i32, %c0_i32_0 : i32, i32
  }
  func.func @transform_7(%arg0: i32) -> (i32, i32) {
    %c0_i32 = arith.constant 0 : i32
    %c0_i32_0 = arith.constant 0 : i32
    return %arg0, %c0_i32 : i32, i32
  }
}

</mosaic_0001>

<llo_original>
// kernel: simple_nn_forward.1
$region0: #{simple_nn_forward.1}
  #allocation0 [shape = 'u32[]', space=smem, size = 0x4, offset = 0x4, fixed_abs, tag = 'smem constant byte address 0x4 - core index']
  #allocation1 [shape = 'u32[144,128]{1,0:T(1,128)}', space=vmem, size = 0x12000, scoped, tag = 'internal scratch']
  %s0 = inlined_call_operand.hbm [shape: f32[8,64], index: 0, kind: input, shape index: {}]
  %s1 = inlined_call_operand.vmem [shape: bf16[64,128], index: 1, kind: input, shape index: {}]
  %s2 = inlined_call_operand.vmem [shape: f32[1,128], index: 2, kind: input, shape index: {}]
  %s3 = inlined_call_operand.vmem [shape: bf16[128,128], index: 3, kind: input, shape index: {}]
  %s4 = inlined_call_operand.vmem [shape: f32[1,128], index: 4, kind: input, shape index: {}]
  %s5 = inlined_call_operand.vmem [shape: bf16[128,32], index: 5, kind: input, shape index: {}]
  %s6 = inlined_call_operand.hbm [shape: f32[1,32], index: 6, kind: input, shape index: {}]
  %s7 = inlined_call_operand.hbm [shape: f32[8,32], index: 7, kind: output, shape index: {}]
  %s8 = sld [smem:[#allocation0]]
  $region46: #{simple_nn_forward.1} parent=0
    _
  %s10 = ssub.s32 1, %s8
  %s11 = scalar_select 0, %s10, %s8
  $region1: #{simple_nn_forward.1} parent=0
    #allocation2 [shape = 'u8[4096]{0}', space=vmem, size = 0x1000, scoped, tag = 'input window, operand 0, single buffered']
    #allocation3 [shape = 's32[1]{0}', space=sflag, size = 0x4, scoped, tag = 'scoped memory for simple_nn_forward.1']
    #allocation4 [shape = 's32[1]{0}', space=sflag, size = 0x4, scoped, tag = 'scoped memory for simple_nn_forward.1']
    #allocation5 [shape = 'u8[512]{0}', space=vmem, size = 0x400, scoped, tag = 'input window, operand 6, single buffered']
    #allocation6 [shape = 's32[1]{0}', space=sflag, size = 0x4, scoped, tag = 'scoped memory for simple_nn_forward.1']
    #allocation7 [shape = 'u8[4096]{0}', space=vmem, size = 0x1000, scoped, tag = 'output window, operand 0, single buffered']
    %12 = vsyncpa [#allocation3], 0
    %13 = vsyncpa [#allocation6], 0
    %14 = vsyncpa [#allocation4], 0
    // Predicated region
    $region2: #{simple_nn_forward.1} parent=1 // pred_check
      _
    $region3: #{simple_nn_forward.1} parent=1 // pred_check_branch
      %16 = sbr.rel (0) target = $region5
    $region4: #{simple_nn_forward.1} parent=1 // pred_region
      %s18 = ssub.s32 128, 128
      %19 = vsyncadd [#allocation3], %s18
      %s21 = sshll.u32 [#allocation2], 4
      %s22 = int_to_ptr.vmem [resolvable:$true] %s21
      %24 = dma.hbm_to_vmem [thread:$0]  %s0, 128, %s22, [#allocation3]
    $region5: #{simple_nn_forward.1} parent=1 // pred_fallthru
      _
    // Predicated region
    $region6: #{simple_nn_forward.1} parent=1 // pred_check
      _
    $region7: #{simple_nn_forward.1} parent=1 // pred_check_branch
      %26 = sbr.rel (0) target = $region9
    $region8: #{simple_nn_forward.1} parent=1 // pred_region
      _
    $region9: #{simple_nn_forward.1} parent=1 // pred_fallthru
      _
    // Predicated region
    $region10: #{simple_nn_forward.1} parent=1 // pred_check
      _
    $region11: #{simple_nn_forward.1} parent=1 // pred_check_branch
      %28 = sbr.rel (0) target = $region13
    $region12: #{simple_nn_forward.1} parent=1 // pred_region
      _
    $region13: #{simple_nn_forward.1} parent=1 // pred_fallthru
      _
    // Predicated region
    $region14: #{simple_nn_forward.1} parent=1 // pred_check
      _
    $region15: #{simple_nn_forward.1} parent=1 // pred_check_branch
      %30 = sbr.rel (0) target = $region17
    $region16: #{simple_nn_forward.1} parent=1 // pred_region
      _
    $region17: #{simple_nn_forward.1} parent=1 // pred_fallthru
      _
    // Predicated region
    $region18: #{simple_nn_forward.1} parent=1 // pred_check
      _
    $region19: #{simple_nn_forward.1} parent=1 // pred_check_branch
      %32 = sbr.rel (0) target = $region21
    $region20: #{simple_nn_forward.1} parent=1 // pred_region
      _
    $region21: #{simple_nn_forward.1} parent=1 // pred_fallthru
      _
    // Predicated region
    $region22: #{simple_nn_forward.1} parent=1 // pred_check
      _
    $region23: #{simple_nn_forward.1} parent=1 // pred_check_branch
      %34 = sbr.rel (0) target = $region25
    $region24: #{simple_nn_forward.1} parent=1 // pred_region
      _
    $region25: #{simple_nn_forward.1} parent=1 // pred_fallthru
      _
    // Predicated region
    $region26: #{simple_nn_forward.1} parent=1 // pred_check
      _
    $region27: #{simple_nn_forward.1} parent=1 // pred_check_branch
      %36 = sbr.rel (0) target = $region29
    $region28: #{simple_nn_forward.1} parent=1 // pred_region
      %s38 = ssub.s32 16, 16
      %39 = vsyncadd [#allocation6], %s38
      %s41 = sshll.u32 [#allocation5], 4
      %s42 = int_to_ptr.vmem [resolvable:$true] %s41
      %44 = dma.hbm_to_vmem [thread:$0]  %s6, 16, %s42, [#allocation6]
    $region29: #{simple_nn_forward.1} parent=1 // pred_fallthru
      _
    // Predicated region
    $region30: #{simple_nn_forward.1} parent=1 // pred_check
      _
    $region31: #{simple_nn_forward.1} parent=1 // pred_check_branch
      %46 = sbr.rel (0) target = $region33
    $region32: #{simple_nn_forward.1} parent=1 // pred_region
      %47 = dma.done [#allocation3], 128
    $region33: #{simple_nn_forward.1} parent=1 // pred_fallthru
      _
    // Predicated region
    $region34: #{simple_nn_forward.1} parent=1 // pred_check
      _
    $region35: #{simple_nn_forward.1} parent=1 // pred_check_branch
      %49 = sbr.rel (0) target = $region37
    $region36: #{simple_nn_forward.1} parent=1 // pred_region
      %50 = dma.done [#allocation6], 16
    $region37: #{simple_nn_forward.1} parent=1 // pred_fallthru
      _
    %v52 = vld [vmem:[#allocation2] sm:$0xff]
    %v53 = vpack.c.bf16 %v52, %v52
    %v54 = vld [vmem:[%s1] sm:$0xf]
    %v55 = vld [vmem:[%s1 + $0x4] sm:$0xf]
    %v56 = vld [vmem:[%s1 + $0x8] sm:$0xf]
    %v57 = vld [vmem:[%s1 + $0xc] sm:$0xf]
    %v58 = vld [vmem:[%s1 + $0x10] sm:$0xf]
    %v59 = vld [vmem:[%s1 + $0x14] sm:$0xf]
    %v60 = vld [vmem:[%s1 + $0x18] sm:$0xf]
    %v61 = vld [vmem:[%s1 + $0x1c] sm:$0xf]
    %v62 = vld [vmem:[%s2] sm:$0x1]
    %v64 = vlaneseq
    %v65 = vshrl.u32 %v64, 7
    %v66 = vsub.s32 0, %v65
    %v67 = vrot.slane %v62, %v66
    %v77 = vunpack.c.l.b16 %v54
    %v78 = vunpack.c.l.b16 %v55
    %v79 = vunpack.c.l.b16 %v56
    %v80 = vunpack.c.l.b16 %v57
    %v81 = vunpack.c.l.b16 %v58
    %v82 = vunpack.c.l.b16 %v59
    %v83 = vunpack.c.l.b16 %v60
    %v84 = vunpack.c.l.b16 %v61
    %v85 = vpack.c.b16 %v78, %v77
    %v86 = vpack.c.b16 %v80, %v79
    %v87 = vpack.c.b16 %v82, %v81
    %v88 = vpack.c.b16 %v84, %v83
    %vm93 = vcmask 523264
    %v95 = vsel %vm93, %v53, 0
    %97 = vmatprep.subr.bf16.mxu0 0
    %98 = vmatpush1.bf16.msra.mxu0 %v85
    %99 = vmatprep.subr.bf16.mxu0 0
    %100 = vmatpush1.bf16.msra.mxu0 %v86
    %101 = vmatprep.subr.bf16.mxu0 0
    %102 = vmatpush1.bf16.msra.mxu0 %v87
    %103 = vmatprep.subr.bf16.mxu0 0
    %104 = vmatpush1.bf16.msra.mxu0 %v88
    %105 = vmatprep.subr.bf16.mxu0 0
    %106 = vmatpush1.bf16.msra.mxu0 0
    %107 = vmatprep.subr.bf16.mxu0 0
    %108 = vmatpush1.bf16.msra.mxu0 0
    %109 = vmatprep.subr.bf16.mxu0 0
    %110 = vmatpush1.bf16.msra.mxu0 0
    %111 = vmatprep.subr.bf16.mxu0 0
    %112 = vmatpush1.bf16.msra.mxu0 0
    %113 = vmatprep.subr.bf16.mxu0 0
    %114 = vmatpush1.bf16.msra.mxu0 0
    %115 = vmatprep.subr.bf16.mxu0 0
    %116 = vmatpush1.bf16.msra.mxu0 0
    %117 = vmatprep.subr.bf16.mxu0 0
    %118 = vmatpush1.bf16.msra.mxu0 0
    %119 = vmatprep.subr.bf16.mxu0 0
    %120 = vmatpush1.bf16.msra.mxu0 0
    %121 = vmatprep.subr.bf16.mxu0 0
    %122 = vmatpush1.bf16.msra.mxu0 0
    %123 = vmatprep.subr.bf16.mxu0 0
    %124 = vmatpush1.bf16.msra.mxu0 0
    %125 = vmatprep.subr.bf16.mxu0 0
    %126 = vmatpush1.bf16.msra.mxu0 0
    %127 = vmatprep.subr.bf16.mxu0 0
    %128 = vmatpush1.bf16.msra.mxu0 0
    %129 = vmatprep.mubr.bf16.mxu0 0
    %130 = vmatmul.mubr.bf16.gmra.mrb[0].mxu0 %v95
    %v131 = vpop.f32.mrb[0].mxu0
    %v132 = vadd.f32 %v67, %v131
    %v133 = vpop.f32.mrb[0].mxu0
    %v134 = vpop.f32.mrb[0].mxu0
    %v135 = vpop.f32.mrb[0].mxu0
    %136 = vdwg.mxu0
    %v137 = vmax.f32 %v132, 0.0
    %v138 = vpack.c.bf16 %v137, %v137
    %v139 = vld [vmem:[%s3] sm:$0xf]
    %v140 = vld [vmem:[%s3 + $0x4] sm:$0xf]
    %v141 = vld [vmem:[%s3 + $0x8] sm:$0xf]
    %v142 = vld [vmem:[%s3 + $0xc] sm:$0xf]
    %v143 = vld [vmem:[%s3 + $0x10] sm:$0xf]
    %v144 = vld [vmem:[%s3 + $0x14] sm:$0xf]
    %v145 = vld [vmem:[%s3 + $0x18] sm:$0xf]
    %v146 = vld [vmem:[%s3 + $0x1c] sm:$0xf]
    %v147 = vld [vmem:[%s3 + $0x20] sm:$0xf]
    %v148 = vld [vmem:[%s3 + $0x24] sm:$0xf]
    %v149 = vld [vmem:[%s3 + $0x28] sm:$0xf]
    %v150 = vld [vmem:[%s3 + $0x2c] sm:$0xf]
    %v151 = vld [vmem:[%s3 + $0x30] sm:$0xf]
    %v152 = vld [vmem:[%s3 + $0x34] sm:$0xf]
    %v153 = vld [vmem:[%s3 + $0x38] sm:$0xf]
    %v154 = vld [vmem:[%s3 + $0x3c] sm:$0xf]
    %v155 = vld [vmem:[%s4] sm:$0x1]
    %v157 = vlaneseq
    %v158 = vshrl.u32 %v157, 7
    %v159 = vsub.s32 0, %v158
    %v160 = vrot.slane %v155, %v159
    %v178 = vunpack.c.l.b16 %v139
    %v179 = vunpack.c.l.b16 %v140
    %v180 = vunpack.c.l.b16 %v141
    %v181 = vunpack.c.l.b16 %v142
    %v182 = vunpack.c.l.b16 %v143
    %v183 = vunpack.c.l.b16 %v144
    %v184 = vunpack.c.l.b16 %v145
    %v185 = vunpack.c.l.b16 %v146
    %v186 = vunpack.c.l.b16 %v147
    %v187 = vunpack.c.l.b16 %v148
    %v188 = vunpack.c.l.b16 %v149
    %v189 = vunpack.c.l.b16 %v150
    %v190 = vunpack.c.l.b16 %v151
    %v191 = vunpack.c.l.b16 %v152
    %v192 = vunpack.c.l.b16 %v153
    %v193 = vunpack.c.l.b16 %v154
    %v194 = vpack.c.b16 %v179, %v178
    %v195 = vpack.c.b16 %v181, %v180
    %v196 = vpack.c.b16 %v183, %v182
    %v197 = vpack.c.b16 %v185, %v184
    %v198 = vpack.c.b16 %v187, %v186
    %v199 = vpack.c.b16 %v189, %v188
    %v200 = vpack.c.b16 %v191, %v190
    %v201 = vpack.c.b16 %v193, %v192
    %210 = vmatprep.subr.bf16.mxu0 0
    %211 = vmatpush1.bf16.msra.mxu0 %v194
    %212 = vmatprep.subr.bf16.mxu0 0
    %213 = vmatpush1.bf16.msra.mxu0 %v195
    %214 = vmatprep.subr.bf16.mxu0 0
    %215 = vmatpush1.bf16.msra.mxu0 %v196
    %216 = vmatprep.subr.bf16.mxu0 0
    %217 = vmatpush1.bf16.msra.mxu0 %v197
    %218 = vmatprep.subr.bf16.mxu0 0
    %219 = vmatpush1.bf16.msra.mxu0 %v198
    %220 = vmatprep.subr.bf16.mxu0 0
    %221 = vmatpush1.bf16.msra.mxu0 %v199
    %222 = vmatprep.subr.bf16.mxu0 0
    %223 = vmatpush1.bf16.msra.mxu0 %v200
    %224 = vmatprep.subr.bf16.mxu0 0
    %225 = vmatpush1.bf16.msra.mxu0 %v201
    %226 = vmatprep.subr.bf16.mxu0 0
    %227 = vmatpush1.bf16.msra.mxu0 0
    %228 = vmatprep.subr.bf16.mxu0 0
    %229 = vmatpush1.bf16.msra.mxu0 0
    %230 = vmatprep.subr.bf16.mxu0 0
    %231 = vmatpush1.bf16.msra.mxu0 0
    %232 = vmatprep.subr.bf16.mxu0 0
    %233 = vmatpush1.bf16.msra.mxu0 0
    %234 = vmatprep.subr.bf16.mxu0 0
    %235 = vmatpush1.bf16.msra.mxu0 0
    %236 = vmatprep.subr.bf16.mxu0 0
    %237 = vmatpush1.bf16.msra.mxu0 0
    %238 = vmatprep.subr.bf16.mxu0 0
    %239 = vmatpush1.bf16.msra.mxu0 0
    %240 = vmatprep.subr.bf16.mxu0 0
    %241 = vmatpush1.bf16.msra.mxu0 0
    %242 = vmatprep.mubr.bf16.mxu0 0
    %243 = vmatmul.mubr.bf16.gmra.mrb[0].mxu0 %v138
    %v244 = vpop.f32.mrb[0].mxu0
    %v245 = vadd.f32 %v160, %v244
    %v246 = vpop.f32.mrb[0].mxu0
    %v247 = vpop.f32.mrb[0].mxu0
    %v248 = vpop.f32.mrb[0].mxu0
    %249 = vdwg.mxu0
    %v250 = vmax.f32 %v245, 0.0
    %v251 = vpack.c.bf16 %v250, %v250
    %v252 = vld [vmem:[%s5] sm:$0xf]
    %v253 = vld [vmem:[%s5 + $0x4] sm:$0xf]
    %v254 = vld [vmem:[%s5 + $0x8] sm:$0xf]
    %v255 = vld [vmem:[%s5 + $0xc] sm:$0xf]
    %v256 = vld [vmem:[%s5 + $0x10] sm:$0xf]
    %v257 = vld [vmem:[%s5 + $0x14] sm:$0xf]
    %v258 = vld [vmem:[%s5 + $0x18] sm:$0xf]
    %v259 = vld [vmem:[%s5 + $0x1c] sm:$0xf]
    %v260 = vld [vmem:[%s5 + $0x20] sm:$0xf]
    %v261 = vld [vmem:[%s5 + $0x24] sm:$0xf]
    %v262 = vld [vmem:[%s5 + $0x28] sm:$0xf]
    %v263 = vld [vmem:[%s5 + $0x2c] sm:$0xf]
    %v264 = vld [vmem:[%s5 + $0x30] sm:$0xf]
    %v265 = vld [vmem:[%s5 + $0x34] sm:$0xf]
    %v266 = vld [vmem:[%s5 + $0x38] sm:$0xf]
    %v267 = vld [vmem:[%s5 + $0x3c] sm:$0xf]
    %v268 = vld [vmem:[#allocation5] sm:$0x1]
    %v270 = vlaneseq
    %v271 = vshrl.u32 %v270, 7
    %v272 = vsub.s32 0, %v271
    %v273 = vrot.slane %v268, %v272
    %v291 = vunpack.c.l.b16 %v252
    %v292 = vunpack.c.l.b16 %v253
    %v293 = vunpack.c.l.b16 %v254
    %v294 = vunpack.c.l.b16 %v255
    %v295 = vunpack.c.l.b16 %v256
    %v296 = vunpack.c.l.b16 %v257
    %v297 = vunpack.c.l.b16 %v258
    %v298 = vunpack.c.l.b16 %v259
    %v299 = vunpack.c.l.b16 %v260
    %v300 = vunpack.c.l.b16 %v261
    %v301 = vunpack.c.l.b16 %v262
    %v302 = vunpack.c.l.b16 %v263
    %v303 = vunpack.c.l.b16 %v264
    %v304 = vunpack.c.l.b16 %v265
    %v305 = vunpack.c.l.b16 %v266
    %v306 = vunpack.c.l.b16 %v267
    %v307 = vpack.c.b16 %v292, %v291
    %v308 = vpack.c.b16 %v294, %v293
    %v309 = vpack.c.b16 %v296, %v295
    %v310 = vpack.c.b16 %v298, %v297
    %v311 = vpack.c.b16 %v300, %v299
    %v312 = vpack.c.b16 %v302, %v301
    %v313 = vpack.c.b16 %v304, %v303
    %v314 = vpack.c.b16 %v306, %v305
    %323 = vmatprep.subr.bf16.mxu0 0
    %324 = vmatpush1.bf16.msra.mxu0 %v307
    %325 = vmatprep.subr.bf16.mxu0 0
    %326 = vmatpush1.bf16.msra.mxu0 %v308
    %327 = vmatprep.subr.bf16.mxu0 0
    %328 = vmatpush1.bf16.msra.mxu0 %v309
    %329 = vmatprep.subr.bf16.mxu0 0
    %330 = vmatpush1.bf16.msra.mxu0 %v310
    %331 = vmatprep.subr.bf16.mxu0 0
    %332 = vmatpush1.bf16.msra.mxu0 %v311
    %333 = vmatprep.subr.bf16.mxu0 0
    %334 = vmatpush1.bf16.msra.mxu0 %v312
    %335 = vmatprep.subr.bf16.mxu0 0
    %336 = vmatpush1.bf16.msra.mxu0 %v313
    %337 = vmatprep.subr.bf16.mxu0 0
    %338 = vmatpush1.bf16.msra.mxu0 %v314
    %339 = vmatprep.subr.bf16.mxu0 0
    %340 = vmatpush1.bf16.msra.mxu0 0
    %341 = vmatprep.subr.bf16.mxu0 0
    %342 = vmatpush1.bf16.msra.mxu0 0
    %343 = vmatprep.subr.bf16.mxu0 0
    %344 = vmatpush1.bf16.msra.mxu0 0
    %345 = vmatprep.subr.bf16.mxu0 0
    %346 = vmatpush1.bf16.msra.mxu0 0
    %347 = vmatprep.subr.bf16.mxu0 0
    %348 = vmatpush1.bf16.msra.mxu0 0
    %349 = vmatprep.subr.bf16.mxu0 0
    %350 = vmatpush1.bf16.msra.mxu0 0
    %351 = vmatprep.subr.bf16.mxu0 0
    %352 = vmatpush1.bf16.msra.mxu0 0
    %353 = vmatprep.subr.bf16.mxu0 0
    %354 = vmatpush1.bf16.msra.mxu0 0
    %355 = vmatprep.mubr.bf16.mxu0 0
    %356 = vmatmul.mubr.bf16.gmra.mrb[0].mxu0 %v251
    %v357 = vpop.f32.mrb[0].mxu0
    %v358 = vadd.f32 %v273, %v357
    %v359 = vpop.f32.mrb[0].mxu0
    %v360 = vpop.f32.mrb[0].mxu0
    %v361 = vpop.f32.mrb[0].mxu0
    %362 = vdwg.mxu0
    %vm363 = vcmask 261120
    %364 = vst.msk [vmem:[#allocation7] sm:$0xff] %vm363, %v358
    // Predicated region
    $region38: #{simple_nn_forward.1} parent=1 // pred_check
      _
    $region39: #{simple_nn_forward.1} parent=1 // pred_check_branch
      %366 = sbr.rel (0) target = $region41
    $region40: #{simple_nn_forward.1} parent=1 // pred_region
      %s368 = ssub.s32 128, 128
      %369 = vsyncadd [#allocation4], %s368
      %s371 = sshll.u32 [#allocation7], 4
      %s372 = int_to_ptr.vmem [resolvable:$true] %s371
      %374 = dma.vmem_to_hbm [thread:$0]  %s372, 128, %s7, [#allocation4]
    $region41: #{simple_nn_forward.1} parent=1 // pred_fallthru
      _
    // Predicated region
    $region42: #{simple_nn_forward.1} parent=1 // pred_check
      _
    $region43: #{simple_nn_forward.1} parent=1 // pred_check_branch
      %376 = sbr.rel (0) target = $region45
    $region44: #{simple_nn_forward.1} parent=1 // pred_region
      %377 = dma.done [#allocation4], 128
    $region45: #{simple_nn_forward.1} parent=1 // pred_fallthru
      _
    %378 = vsyncpa [#allocation3], 1
    %379 = vsyncpa [#allocation6], 1
    %380 = vsyncpa [#allocation4], 1

</llo_original>
